<compile_context>
chip_gen: v5e
topology: v5e:2x2
jax: 0.10.0
libtpu: 0.0.40
codegen_flags: <defaults>
</compile_context>

<pallas_src>
import functools

import numpy as np
import jax
import jax.numpy as jnp
from jax.experimental import pallas as pl
from jax.experimental.pallas import tpu as pltpu


# ----------------------------------------------------------------------------
# Pallas kernels
# ----------------------------------------------------------------------------
def _normalize_kernel(x_ref, o_ref):
    """Per-series z-normalization (RocketClassifier normalize_input=True)."""
    x = x_ref[...]                                        # (tb, L) f32
    mu = jnp.mean(x, axis=1, keepdims=True)
    var = jnp.mean((x - mu) ** 2, axis=1, keepdims=True)
    # TODO(synk): sktime's handling of zero-variance series differs slightly (eps placement).
    o_ref[...] = (x - mu) / (jnp.sqrt(var) + 1e-8)


def _rocket_predict_kernel(xcols_ref, wfull_ref, bias_ref, lenout_ref, invlen_ref,
                           wc_ppv_ref, wc_max_ref, bcls_ref,
                           scores_ref, pred_ref, acc_ref, *, lc, nc):
    """One (batch-tile, kernel-tile) step: L-chunked conv matmuls -> PPV/MAX -> partial ridge scores."""
    k = pl.program_id(1)

    @pl.when(k == 0)
    def _():
        acc_ref[...] = jnp.zeros_like(acc_ref)

    tb, _, rp = xcols_ref.shape
    tk = wfull_ref.shape[1]
    n_cls = bcls_ref.shape[1]
    neg_big = jnp.finfo(jnp.float32).min                  # dtype-aware masked-max sentinel

    bias = bias_ref[...]                                  # (1, tk) f32
    neg_bias = -bias                                      # PPV threshold: y > -bias  <=>  y+bias > 0
    lenout = lenout_ref[...]                              # (1, tk) int32

    def body(c, carry):
        cnt, mx = carry
        t0 = pl.multiple_of(c * lc, 8)
        xc = xcols_ref[:, pl.ds(t0, lc), :].reshape(tb * lc, rp)            # bf16
        y = jnp.dot(xc, wfull_ref[...],
                    preferred_element_type=jnp.float32).reshape(tb, lc, tk)  # f32
        t_idx = t0 + jax.lax.broadcasted_iota(jnp.int32, (1, lc, tk), 1)
        ym = jnp.where(t_idx < lenout[:, None, :], y, neg_big)              # single masked copy
        cnt = cnt + jnp.sum((ym > neg_bias[:, None, :]).astype(jnp.float32), axis=1)
        mx = jnp.maximum(mx, jnp.max(ym, axis=1))
        return cnt, mx

    cnt0 = jnp.zeros((tb, tk), jnp.float32)
    mx0 = jnp.full((tb, tk), neg_big, jnp.float32)
    cnt, mx = jax.lax.fori_loop(0, nc, body, (cnt0, mx0), unroll=nc <= 8)

    ppv = cnt * invlen_ref[...]                           # host-precomputed 1/lenout (no divide)
    mxf = mx + bias                                       # bias folded back into the max feature
    # Ridge classifier partial decision for this kernel tile: two small bf16 dots,
    # no concatenates, no Precision.HIGHEST (f32 accumulation via preferred_element_type).
    acc_ref[...] += (
        jnp.dot(ppv.astype(jnp.bfloat16), wc_ppv_ref[...],
                preferred_element_type=jnp.float32)
        + jnp.dot(mxf.astype(jnp.bfloat16), wc_max_ref[...],
                  preferred_element_type=jnp.float32))

    @pl.when(k == pl.num_programs(1) - 1)
    def _():
        scores = acc_ref[...] + bcls_ref[...]             # (tb, C)
        scores_ref[...] = scores
        cls_idx = jax.lax.broadcasted_iota(jnp.int32, scores.shape, 1)
        best = jnp.max(scores, axis=1, keepdims=True)
        pred_ref[...] = jnp.min(jnp.where(scores >= best, cls_idx, n_cls),
                                axis=1, keepdims=True).astype(jnp.int32)


# ----------------------------------------------------------------------------
# Pallas wrappers
# ----------------------------------------------------------------------------
def normalize_series(x, tb):
    B, L = x.shape
    return pl.pallas_call(
        _normalize_kernel,
        out_shape=jax.ShapeDtypeStruct((B, L), jnp.float32),
        grid=(B // tb,),
        in_specs=[pl.BlockSpec((tb, L), lambda i: (i, 0))],
        out_specs=pl.BlockSpec((tb, L), lambda i: (i, 0)),
        compiler_params=pltpu.CompilerParams(dimension_semantics=("parallel",)),
    )(x)


def rocket_predict(xcols, wfull, bias, lenout_i, invlen, wc_ppv, wc_max, bcls,
                   tb, tk, lc, vmem_limit):
    Bp, Lpad, Rp = xcols.shape
    Kp = wfull.shape[1]
    C = bcls.shape[1]
    nc = Lpad // lc
    kernel = functools.partial(_rocket_predict_kernel, lc=lc, nc=nc)
    grid = (Bp // tb, Kp // tk)            # batch tiles (parallel) x kernel tiles (reduction)
    return pl.pallas_call(
        kernel,
        out_shape=(jax.ShapeDtypeStruct((Bp, C), jnp.float32),
                   jax.ShapeDtypeStruct((Bp, 1), jnp.int32)),
        grid=grid,
        in_specs=[
            pl.BlockSpec((tb, Lpad, Rp), lambda b, k: (b, 0, 0)),   # im2col windows (bf16)
            pl.BlockSpec((Rp, tk), lambda b, k: (0, k)),            # filter bank (bf16)
            pl.BlockSpec((1, tk), lambda b, k: (0, k)),             # conv bias (f32)
            pl.BlockSpec((1, tk), lambda b, k: (0, k)),             # valid output length (i32)
            pl.BlockSpec((1, tk), lambda b, k: (0, k)),             # 1/lenout (f32)
            pl.BlockSpec((tk, C), lambda b, k: (k, 0)),             # ridge weights, PPV rows (bf16)
            pl.BlockSpec((tk, C), lambda b, k: (k, 0)),             # ridge weights, MAX rows (bf16)
            pl.BlockSpec((1, C), lambda b, k: (0, 0)),              # ridge intercept (f32)
        ],
        out_specs=(pl.BlockSpec((tb, C), lambda b, k: (b, 0)),
                   pl.BlockSpec((tb, 1), lambda b, k: (b, 0))),
        scratch_shapes=[pltpu.VMEM((tb, C), jnp.float32)],
        compiler_params=pltpu.CompilerParams(
            dimension_semantics=("parallel", "arbitrary"),
            vmem_limit_bytes=int(vmem_limit)),
    )(xcols, wfull, bias, lenout_i, invlen, wc_ppv, wc_max, bcls)


# ----------------------------------------------------------------------------
# ROCKET parameter generation (deterministic), tiling heuristics, and glue
# ----------------------------------------------------------------------------
def _round_up(n, m):
    return -(-n // m) * m


def _physical_vmem_bytes():
    try:
        return int(pltpu.get_tpu_info().vmem_capacity_bytes)
    except Exception:
        return 64 * 1024 * 1024           # conservative (v7x-sized) fallback


def _choose_tiles(batch_hint, L, Rp, tk, budget):
    """Pick (tb, lc, Lpad): the biggest batch tile whose VMEM working set fits `budget`,
    capped so the 'parallel' batch axis still has >= 2 grid steps (v7x has 2 TensorCores)."""
    L8 = _round_up(max(L, 8), 8)
    cap = min(64, max(8, _round_up(max(1, -(-batch_hint // 2)), 8)))
    tb = cap
    while True:
        lc_target = max(8, min(L8, (2048 // tb) // 8 * 8))   # ~1-2K matmul rows per chunk
        nc = -(-L8 // lc_target)
        lc = _round_up(-(-L8 // nc), 8)
        Lpad = nc * lc
        need = (2 * tb * Lpad * Rp * 2      # double-buffered bf16 im2col block
                + 2 * Rp * tk * 2           # double-buffered bf16 filter-bank tile
                + tb * lc * Rp * 2          # per-chunk LHS slice (bf16)
                + tb * lc * tk * 4          # per-chunk f32 conv output
                + 6 * tb * tk * 4)          # count / max carries + ppv / max features
        if need <= budget or tb <= 8:
            return tb, lc, Lpad, need
        tb = max(8, _round_up(tb // 2, 8))


def generate_rocket_params(num_kernels, input_length, random_state, k_tile):
    """Sample ROCKET kernels (length/weights/bias/dilation/padding) and densify into a
    lane-aligned (Rpad, Kpad) filter bank so the conv becomes plain MXU matmuls."""
    rng = np.random.RandomState(random_state)
    candidate_lengths = np.array([7, 9, 11])
    lengths = candidate_lengths[rng.randint(0, 3, num_kernels)].astype(np.int64)

    weights, biases, dilations, paddings = [], [], [], []
    for l in lengths:
        w = rng.normal(0.0, 1.0, int(l))
        w = w - w.mean()
        weights.append(w)
        biases.append(rng.uniform(-1.0, 1.0))
        max_exp = max(0.0, np.log2((input_length - 1) / (int(l) - 1)))
        d = int(2 ** rng.uniform(0.0, max_exp))
        dilations.append(d)
        p = ((int(l) - 1) * d) // 2 if rng.randint(2) == 1 else 0
        paddings.append(p)
    dilations = np.array(dilations, np.int64)
    paddings = np.array(paddings, np.int64)

    P = int(paddings.max())
    spans = (P - paddings) + (lengths - 1) * dilations + 1
    R = int(spans.max())
    Rp = _round_up(R, 128)                  # lane-align the MXU contraction dim

    K = num_kernels
    Kp = _round_up(K, k_tile)               # tile/lane-align the kernel (feature) dim
    wfull = np.zeros((Rp, Kp), np.float32)
    bias = np.zeros((1, Kp), np.float32)
    # NOTE (padded-column invariant): columns k >= K keep zero filter weights, zero bias,
    # lenout = input_length and (below, in fit) zero ridge-weight rows, so they contribute
    # exactly zero to the scores.  Keep these four together if the padding scheme changes.
    lenout = np.full((1, Kp), float(input_length), np.float32)
    for k in range(K):
        l, d, p = int(lengths[k]), int(dilations[k]), int(paddings[k])
        off = P - p
        for j in range(l):
            wfull[off + j * d, k] = weights[k][j]
        lo = input_length + 2 * p - (l - 1) * d
        assert 1 <= lo <= input_length, "unexpected ROCKET conv output length"
        lenout[0, k] = lo
        bias[0, k] = biases[k]
    return wfull, bias, lenout, P, Rp, Kp


class RocketWrapperPallas:
    """Pallas/TPU equivalent of RocketWrapper: fit() samples kernels + synthetic ridge
    weights; forward() == rocket.predict(x)."""

    def __init__(self, num_kernels=10000, normalize_input=True,
                 normalize_features=False, random_state=42,
                 alphas=(0.001, 0.01, 0.1, 1, 10, 100, 1000), n_classes=3):
        self.num_kernels = num_kernels
        self.normalize_input = normalize_input
        self.normalize_features = normalize_features   # False by default; unused
        self.random_state = random_state
        self.alphas = alphas
        self.n_classes = n_classes
        self.fitted = False
        # TODO(synk): RidgeClassifierCV alpha selection / feature normalization are
        # training-time procedures with no inference compute; synthetic fitted ridge
        # weights stand in for the trained classifier.

    def fit(self, x_train):
        L = int(x_train.shape[-1])
        B_train = int(x_train.shape[0])
        K = self.num_kernels
        # tk = 256 fills the 256-wide v6e/v7x MXU and stays VMEM-friendly on v7x;
        # on v5e's 128-wide MXU a 256-wide tile simply splits into two passes.
        self.tk = 256
        wfull, bias, lenout, P, Rp, Kp = generate_rocket_params(
            K, L, self.random_state, self.tk)
        self.L, self.P, self.Rp, self.Kp = L, P, Rp, Kp

        phys = _physical_vmem_bytes()
        budget = int(min(phys - (16 << 20), 100 << 20) * 0.6)
        self.tb, self.lc, self.Lpad, need = _choose_tiles(B_train, L, Rp, self.tk, budget)
        self.vmem_limit = min(phys - (16 << 20), max(need + (8 << 20), 64 << 20))

        self.wfull = jnp.asarray(wfull, jnp.bfloat16)        # MXU operand
        self.bias = jnp.asarray(bias, jnp.float32)
        self.lenout_i = jnp.asarray(lenout, jnp.int32)
        self.invlen = jnp.asarray(1.0 / lenout, jnp.float32)

        kw, kb = jax.random.split(jax.random.PRNGKey(self.random_state))
        wc = 0.1 * jax.random.normal(kw, (2 * K, self.n_classes), jnp.float32)
        pad = Kp - K
        self.wc_ppv = jnp.pad(wc[:K], ((0, pad), (0, 0))).astype(jnp.bfloat16)
        self.wc_max = jnp.pad(wc[K:], ((0, pad), (0, 0))).astype(jnp.bfloat16)
        self.bcls = 0.1 * jax.random.normal(kb, (1, self.n_classes), jnp.float32)
        self.fitted = True

    def _preprocess(self, x):
        # x: (B, C=1, L) NCW univariate -> lane-aligned bf16 window slab (Bp, Lpad, Rp)
        B = int(x.shape[0])
        L = int(x.shape[-1])
        assert L == self.L, "series length must match the fitted length"
        x2 = jnp.asarray(x, jnp.float32).reshape(B, L)
        n_tiles = max(2, -(-B // self.tb))            # >= 2 batch tiles (v7x: 2 TensorCores)
        Bp = n_tiles * self.tb
        x2 = jnp.pad(x2, ((0, Bp - B), (0, 0)))
        xn = normalize_series(x2, self.tb) if self.normalize_input else x2
        total = self.P + self.Lpad + self.Rp          # left conv padding + full window reach
        xpad = jnp.pad(xn, ((0, 0), (self.P, total - self.P - L)))
        idx = jnp.arange(self.Lpad)[:, None] + jnp.arange(self.Rp)[None, :]
        xcols = xpad[:, idx].astype(jnp.bfloat16)     # (Bp, Lpad, Rp)
        # TODO(synk): build these windows inside the kernel (per-sublane strided pltpu.roll
        # of the padded series) to remove the Rp-fold im2col redundancy in HBM.
        return xcols

    def _predict(self, x):
        B = int(x.shape[0])
        xcols = self._preprocess(x)
        scores, pred = rocket_predict(
            xcols, self.wfull, self.bias, self.lenout_i, self.invlen,
            self.wc_ppv, self.wc_max, self.bcls,
            self.tb, self.tk, self.lc, self.vmem_limit)
        return scores[:B], pred[:B, 0]

    def forward(self, x):
        if not self.fitted:
            raise RuntimeError("RocketWrapper has not been fitted yet. "
                               "Call 'fit' before 'forward'.")
        _, pred = self._predict(x)
        return pred


# ----------------------------------------------------------------------------
# Pure-numpy reference (same dense formulation, same bf16 operands) for checking
# ----------------------------------------------------------------------------
def _bf16_round(a):
    return np.asarray(jnp.asarray(np.asarray(a, np.float32)).astype(jnp.bfloat16)
                      ).astype(np.float64)


def numpy_reference(xcols_bf16, wfull_bf16, bias, lenout, invlen, wc_ppv, wc_max, bcls):
    cols = np.asarray(xcols_bf16).astype(np.float64)          # (Bp, Lpad, Rp)
    w = np.asarray(wfull_bf16).astype(np.float64)             # (Rp, Kp)
    bias = np.asarray(bias).astype(np.float64)                # (1, Kp)
    lenout = np.asarray(lenout).astype(np.float64)            # (1, Kp)
    invlen = np.asarray(invlen).astype(np.float64)            # (1, Kp)
    y = cols @ w + bias                                       # (Bp, Lpad, Kp)
    Lpad = cols.shape[1]
    valid = np.arange(Lpad)[None, :, None] < lenout[:, None, :]
    ppv = np.where(valid & (y > 0.0), 1.0, 0.0).sum(axis=1) * invlen
    mx = np.where(valid, y, np.finfo(np.float32).min).max(axis=1)
    scores = (_bf16_round(ppv) @ np.asarray(wc_ppv).astype(np.float64)
              + _bf16_round(mx) @ np.asarray(wc_max).astype(np.float64)
              + np.asarray(bcls).astype(np.float64))
    return scores, scores.argmax(axis=1)


if __name__ == "__main__":
    B, C_in, L = 2, 1, 16
    num_kernels = 300           # module default is 10000; small demo -> Kp=512 with tk=256,
                                # i.e. two kernel-tiles, exercising the accumulator path

    key = jax.random.PRNGKey(0)
    x = jax.random.normal(key, (B, C_in, L), dtype=jnp.float32)

    model = RocketWrapperPallas(num_kernels=num_kernels, normalize_input=True,
                                normalize_features=False, random_state=42,
                                n_classes=3)
    model.fit(x)

    scores, preds = model._predict(x)
    scores = jax.block_until_ready(scores)
    preds = jax.block_until_ready(preds)

    fwd = jax.block_until_ready(model.forward(x))
    assert np.array_equal(np.asarray(fwd), np.asarray(preds))

    # Reference computed from the exact same bf16 operands the kernel consumes.
    xcols = jax.block_until_ready(model._preprocess(x))
    ref_scores, ref_preds = numpy_reference(
        xcols, model.wfull, model.bias, model.lenout_i, model.invlen,
        model.wc_ppv, model.wc_max, model.bcls)
    ref_scores, ref_preds = ref_scores[:B], ref_preds[:B]

    max_diff = float(np.max(np.abs(np.asarray(scores) - ref_scores)))
    assert max_diff < 5e-2, f"score mismatch vs reference: {max_diff}"

    p = np.asarray(preds)
    if not np.array_equal(p, ref_preds):
        # Tolerate an argmax flip only when the reference's own top-2 margin is within
        # numeric tolerance of the score comparison threshold.
        srt = np.sort(ref_scores, axis=1)
        margin = srt[:, -1] - srt[:, -2]
        mism = p != ref_preds
        assert np.all(margin[mism] < 5e-2), \
            f"prediction mismatch: {p} vs {ref_preds} (margins {margin[mism]})"

    print("KERNEL_OK")
</pallas_src>

<mosaic_0001>
module attributes {stable_mosaic.version = 11 : i64} {
  func.func @_normalize_kernel(%arg0: i32, %arg1: memref<8x16xf32, #tpu.memory_space<vmem>>, %arg2: memref<8x16xf32, #tpu.memory_space<vmem>>) attributes {dimension_semantics = [#tpu.dimension_semantics<parallel>], iteration_bounds = array<i64: 2>, scalar_prefetch = 0 : i64, scratch_operands = 0 : i64, tpu.core_type = #tpu.core_type<tc>, window_params = [{transform_indices = @transform_0, window_bounds = array<i64: 8, 16>}, {transform_indices = @transform_1, window_bounds = array<i64: 8, 16>}]} {
    %c0 = arith.constant 0 : index
    %c0_0 = arith.constant 0 : index
    %0 = vector.load %arg1[%c0, %c0_0] : memref<8x16xf32, #tpu.memory_space<vmem>>, vector<8x16xf32>
    %cst = arith.constant dense<0.000000e+00> : vector<8xf32>
    %1 = vector.multi_reduction <add>, %0, %cst [1] : vector<8x16xf32> to vector<8xf32>
    %2 = vector.shape_cast %1 : vector<8xf32> to vector<8x1xf32>
    %cst_1 = arith.constant 1.600000e+01 : f32
    %3 = vector.broadcast %cst_1 : f32 to vector<8x1xf32>
    %4 = arith.divf %2, %3 : vector<8x1xf32>
    %5 = vector.broadcast %4 : vector<8x1xf32> to vector<8x16xf32>
    %6 = arith.subf %0, %5 : vector<8x16xf32>
    %7 = arith.mulf %6, %6 : vector<8x16xf32>
    %cst_2 = arith.constant dense<0.000000e+00> : vector<8xf32>
    %8 = vector.multi_reduction <add>, %7, %cst_2 [1] : vector<8x16xf32> to vector<8xf32>
    %9 = vector.shape_cast %8 : vector<8xf32> to vector<8x1xf32>
    %cst_3 = arith.constant 1.600000e+01 : f32
    %10 = vector.broadcast %cst_3 : f32 to vector<8x1xf32>
    %11 = arith.divf %9, %10 : vector<8x1xf32>
    %12 = vector.broadcast %4 : vector<8x1xf32> to vector<8x16xf32>
    %13 = arith.subf %0, %12 : vector<8x16xf32>
    %14 = math.sqrt %11 : vector<8x1xf32>
    %cst_4 = arith.constant 9.99999993E-9 : f32
    %15 = vector.broadcast %cst_4 : f32 to vector<8x1xf32>
    %16 = arith.addf %14, %15 : vector<8x1xf32>
    %17 = vector.broadcast %16 : vector<8x1xf32> to vector<8x16xf32>
    %18 = arith.divf %13, %17 : vector<8x16xf32>
    %c0_5 = arith.constant 0 : index
    %c0_6 = arith.constant 0 : index
    %19 = vector.load %arg2[%c0_5, %c0_6] : memref<8x16xf32, #tpu.memory_space<vmem>>, vector<8x16xf32>
    tpu.vector_store %arg2[%c0_5, %c0_6], %18 {strides = array<i32>} : memref<8x16xf32, #tpu.memory_space<vmem>>, vector<8x16xf32>,
    return
  }
  func.func @transform_0(%arg0: i32) -> (i32, i32) {
    %c0_i32 = arith.constant 0 : i32
    %c0_i32_0 = arith.constant 0 : i32
    return %arg0, %c0_i32 : i32, i32
  }
  func.func @transform_1(%arg0: i32) -> (i32, i32) {
    %c0_i32 = arith.constant 0 : i32
    %c0_i32_0 = arith.constant 0 : i32
    return %arg0, %c0_i32 : i32, i32
  }
}

</mosaic_0001>

<llo_original>
// kernel: tpu_custom_call.1
$region0: #{tpu_custom_call.1}
  #allocation0 [shape = 'u32[]', space=smem, size = 0x4, offset = 0x4, fixed_abs, tag = 'smem constant byte address 0x4 - core index']
  #allocation1 [shape = 'u32[72,128]{1,0:T(1,128)}', space=vmem, size = 0x9000, scoped, tag = 'internal scratch']
  %s0 = inlined_call_operand.hbm [shape: f32[16,16], index: 0, kind: input, shape index: {}]
  %s1 = inlined_call_operand.hbm [shape: f32[16,16], index: 1, kind: output, shape index: {}]
  %s2 = sld [smem:[#allocation0]]
  $region41: #{tpu_custom_call.1} parent=0
    _
  %s4 = ssub.s32 1, %s2
  %s5 = scalar_select 0, %s4, %s2
  $region1: #{tpu_custom_call.1} parent=0
    #allocation2 [shape = 'u8[8192]{0}', space=vmem, size = 0x2000, scoped, tag = 'input window, operand 0']
    #allocation3 [shape = 's32[2]{0}', space=sflag, size = 0x8, scoped, tag = 'scoped memory for tpu_custom_call.1']
    #allocation4 [shape = 's32[2]{0}', space=sflag, size = 0x8, scoped, tag = 'scoped memory for tpu_custom_call.1']
    #allocation5 [shape = 'u8[8192]{0}', space=vmem, size = 0x2000, scoped, tag = 'output window, operand 0']
    %6 = vsyncpa [#allocation3], 0
    %s7 = scalar_lea.sflag [#allocation3], 1
    %8 = vsyncpa %s7, 0
    %9 = vsyncpa [#allocation4], 0
    %s10 = scalar_lea.sflag [#allocation4], 1
    %11 = vsyncpa %s10, 0
    loop: start=0, step=1, limit=4
    $region2: #{tpu_custom_call.1} parent=1 // loop_pre_header
      _
    $region3: #{tpu_custom_call.1} parent=1 // loop_header
      %s13 = sphi 0, %s17
      %p14 = scmp.ge.s32.totalorder %s13, 4
      %s23 = sphi 0, %s25
      %s26 = sphi 0, %s23
      %s27 = sphi 0, %s26
      %s43 = sphi 0, %s27
      %s49 = sphi 0, %s51
      %s52 = sphi 0, %s49
      %s53 = sphi 0, %s52
      %s69 = sphi 0, %s53
    $region4: #{tpu_custom_call.1} parent=1 // loop_header_branch
      %16 = sbr.rel (%p14) target = $region8
    $region5: #{tpu_custom_call.1} parent=1 // loop_body
      %s18 = ssub.s32 %s13, 1
      %s19 = ssub.s32 %s13, 2
      %s20 = sadd.s32 %s13, 1
      %s21 = ssub.s32 %s13, %s20
      %p22 = scmp.eq.s32.totalorder %s21, 0
      %s24 = sadd.s32 %s23, 1
      %s25 = scalar_select %p22, %s23, %s24
      %p28 = pneg %p22
      %p29 = scmp.eq.s32.totalorder %s13, 1
      %p30 = por %p28, %p29
      %p31 = scmp.ne.s32.totalorder %s23, %s26
      %p32 = scmp.eq.s32.totalorder %s13, 0
      %p33 = por %p31, %p32
      %p34 = scmp.ne.s32.totalorder %s23, %s26
      %p35 = scmp.eq.s32.totalorder %s18, 1
      %p36 = por %p34, %p35
      %p37 = scmp.ne.s32.totalorder %s26, %s27
      %p38 = scmp.eq.s32.totalorder %s18, 0
      %p39 = por %p37, %p38
      %p40 = scmp.ne.s32.totalorder %s26, %s27
      %p41 = scmp.eq.s32.totalorder %s19, 1
      %p42 = por %p40, %p41
      %p44 = scmp.ne.s32.totalorder %s27, %s43
      %p45 = scmp.eq.s32.totalorder %s19, 0
      %p46 = por %p44, %p45
      %s47 = ssub.s32 %s13, %s20
      %p48 = scmp.eq.s32.totalorder %s47, 0
      %s50 = sadd.s32 %s49, 1
      %s51 = scalar_select %p48, %s49, %s50
      %p54 = pneg %p48
      %p55 = scmp.eq.s32.totalorder %s13, 1
      %p56 = por %p54, %p55
      %p57 = scmp.ne.s32.totalorder %s49, %s52
      %p58 = scmp.eq.s32.totalorder %s13, 0
      %p59 = por %p57, %p58
      %p60 = scmp.ne.s32.totalorder %s49, %s52
      %p61 = scmp.eq.s32.totalorder %s18, 1
      %p62 = por %p60, %p61
      %p63 = scmp.ne.s32.totalorder %s52, %s53
      %p64 = scmp.eq.s32.totalorder %s18, 0
      %p65 = por %p63, %p64
      %p66 = scmp.ne.s32.totalorder %s52, %s53
      %p67 = scmp.eq.s32.totalorder %s19, 1
      %p68 = por %p66, %p67
      %p70 = scmp.ne.s32.totalorder %s53, %s69
      %p71 = scmp.eq.s32.totalorder %s19, 0
      %p72 = por %p70, %p71
      %p73 = scmp.le.s32.totalorder 1, %s13
      %p74 = scmp.lt.s32.totalorder %s13, 3
      %p75 = pnand %p73, %p74
      %p76 = pneg %p75
      // Predicated region
      $region9: #{tpu_custom_call.1} parent=5 // pred_check
        _
      $region10: #{tpu_custom_call.1} parent=5 // pred_check_branch
        %78 = sbr.rel (%p75) target = $region12
      $region11: #{tpu_custom_call.1} parent=5 // pred_region
        %s79 = ssub.s32 %s13, 1
      $region12: #{tpu_custom_call.1} parent=5 // pred_fallthru
        _
      %p80 = scmp.lt.s32.totalorder %s13, 2
      // Predicated region
      $region13: #{tpu_custom_call.1} parent=5 // pred_check
        %p81 = pneg %p80
      $region14: #{tpu_custom_call.1} parent=5 // pred_check_branch
        %83 = sbr.rel (%p81) target = $region16
      $region15: #{tpu_custom_call.1} parent=5 // pred_region
        // Predicated region
        $region17: #{tpu_custom_call.1} parent=15 // pred_check
          %p84 = pneg %p33
        $region18: #{tpu_custom_call.1} parent=15 // pred_check_branch
          %86 = sbr.rel (%p84) target = $region20
        $region19: #{tpu_custom_call.1} parent=15 // pred_region
          %s87 = sand.u32 %s23, 1
          %s88 = scalar_lea.sflag [#allocation3], %s87
          %s89 = sand.u32 %s23, 1
          %s90 = smul.addr %s89, 8
          %s91 = scalar_lea.vmem [#allocation2], %s90
          %93 = vsyncadd %s88, 0
          %s94 = smul.addr %s13, 8
          %s95 = scalar_lea.hbm %s0, %s94
          %s97 = sshll.u32 %s95, 4
          %s98 = int_to_ptr.hbm [resolvable:$true] %s97
          %s99 = sshll.u32 %s91, 4
          %s100 = int_to_ptr.vmem [resolvable:$true] %s99
          %102 = dma.hbm_to_vmem [thread:$0]  %s98, 128, %s100, %s88
        $region20: #{tpu_custom_call.1} parent=15 // pred_fallthru
          _
      $region16: #{tpu_custom_call.1} parent=5 // pred_fallthru
        _
      %p103 = scmp.le.s32.totalorder 1, %s13
      %p104 = scmp.lt.s32.totalorder %s13, 3
      %p105 = pnand %p103, %p104
      %p106 = pneg %p105
      // Predicated region
      $region21: #{tpu_custom_call.1} parent=5 // pred_check
        _
      $region22: #{tpu_custom_call.1} parent=5 // pred_check_branch
        %108 = sbr.rel (%p105) target = $region24
      $region23: #{tpu_custom_call.1} parent=5 // pred_region
        %s109 = ssub.s32 %s13, 1
        %s110 = sand.u32 %s26, 1
        %s111 = scalar_lea.sflag [#allocation3], %s110
        %s112 = sand.u32 %s26, 1
        %s113 = smul.addr %s112, 8
        %s114 = scalar_lea.vmem [#allocation2], %s113
        // Predicated region
        $region25: #{tpu_custom_call.1} parent=23 // pred_check
          %p115 = pneg %p39
        $region26: #{tpu_custom_call.1} parent=23 // pred_check_branch
          %117 = sbr.rel (%p115) target = $region28
        $region27: #{tpu_custom_call.1} parent=23 // pred_region
          %119 = dma.done %s111, 128
        $region28: #{tpu_custom_call.1} parent=23 // pred_fallthru
          _
        %s120 = sand.u32 %s26, 1
        %s121 = scalar_lea.sflag [#allocation3], %s120
        %s122 = sand.u32 %s26, 1
        %s123 = smul.addr %s122, 8
        %s124 = scalar_lea.vmem [#allocation2], %s123
        %p125 = pneg %p39
        %p126 = pneg %p36
        %p127 = pneg %p65
        %p128 = pneg %p62
        %s129 = sand.u32 %s52, 1
        %s130 = scalar_lea.sflag [#allocation4], %s129
        %s131 = sand.u32 %s52, 1
        %s132 = smul.addr %s131, 8
        %s133 = scalar_lea.vmem [#allocation5], %s132
        %v134 = vld [vmem:[%s114] sm:$0xff]
        %vm135 = vcmask 130048
        %v136 = vsel %vm135, %v134, 0.0
        %137 = vadd.xlane.f32.xlu0 %v136
        %v138 = vpop.xlane.xlu0 %137
        %v139 = vrcp.pop 16.0
        %v140 = vmul.f32 16.0, %v139
        %v141 = vsub.f32 1.0, %v140
        %v142 = vmul.f32 %v139, %v141
        %v143 = vadd.f32 %v139, %v142
        %vm144 = vweird.f32 %v139
        %v145 = vsel %vm144, %v139, %v143
        %v146 = vmul.f32 %v138, %v145
        %v147 = vsub.f32 %v134, %v146
        %v148 = vmul.f32 %v147, %v147
        %v149 = vsel %vm135, %v148, 0.0
        %150 = vadd.xlane.f32.xlu0 %v149
        %v151 = vpop.xlane.xlu0 %150
        %v152 = vmul.f32 %v151, %v145
        %v153 = vrsqrt.pop %v152
        %v154 = vmul.f32 %v153, %v152
        %v155 = vmul.f32 %v154, %v153
        %v156 = vmul.f32 0.5, %v155
        %v157 = vsub.f32 1.5, %v156
        %v158 = vmul.f32 %v153, %v157
        %v159 = vmul.f32 %v152, %v158
        %vm160 = vcmp.eq.f32.partialorder %v152, inf
        %v161 = vsel %vm160, %v152, %v159
        %vm162 = vcmp.eq.f32.partialorder %v152, 0.0
        %v163 = vand.u32 %v152, 2147483648
        %v164 = vsel %vm162, %v163, %v161
        %v165 = vadd.f32 %v164, 1e-08
        %v166 = vrcp.pop %v165
        %v167 = vmul.f32 %v165, %v166
        %v168 = vsub.f32 1.0, %v167
        %v169 = vmul.f32 %v166, %v168
        %v170 = vadd.f32 %v166, %v169
        %vm171 = vweird.f32 %v165
        %vm172 = vweird.f32 %v166
        %vm173 = vmor %vm171, %vm172
        %v174 = vsel %vm173, %v166, %v170
        %v175 = vand.u32 2147483647, %v165
        %vm176 = vcmp.eq.f32.partialorder %v175, 8.507059e+37
        %v177 = vand.u32 %v165, 2147483648
        %v178 = vor.u32 1.1754944e-38, %v177
        %v179 = vsel %vm176, %v178, %v174
        %v180 = vmul.f32 %v147, %v179
        %181 = vst.msk [vmem:[%s133] sm:$0xff] %vm135, %v180
        %s182 = sand.u32 %s52, 1
        %s183 = scalar_lea.sflag [#allocation4], %s182
        %s184 = sand.u32 %s52, 1
        %s185 = smul.addr %s184, 8
        %s186 = scalar_lea.vmem [#allocation5], %s185
        // Predicated region
        $region29: #{tpu_custom_call.1} parent=23 // pred_check
          %p187 = pneg %p62
        $region30: #{tpu_custom_call.1} parent=23 // pred_check_branch
          %189 = sbr.rel (%p187) target = $region32
        $region31: #{tpu_custom_call.1} parent=23 // pred_region
          %191 = vsyncadd %s183, 0
          %s192 = smul.addr %s18, 8
          %s193 = scalar_lea.hbm %s1, %s192
          %s195 = sshll.u32 %s186, 4
          %s196 = int_to_ptr.vmem [resolvable:$true] %s195
          %s197 = sshll.u32 %s193, 4
          %s198 = int_to_ptr.hbm [resolvable:$true] %s197
          %200 = dma.vmem_to_hbm [thread:$0]  %s196, 128, %s198, %s183
        $region32: #{tpu_custom_call.1} parent=23 // pred_fallthru
          _
      $region24: #{tpu_custom_call.1} parent=5 // pred_fallthru
        _
      %p201 = scmp.le.s32.totalorder 2, %s13
      // Predicated region
      $region33: #{tpu_custom_call.1} parent=5 // pred_check
        %p202 = pneg %p201
      $region34: #{tpu_custom_call.1} parent=5 // pred_check_branch
        %204 = sbr.rel (%p202) target = $region36
      $region35: #{tpu_custom_call.1} parent=5 // pred_region
        %s205 = ssub.s32 %s13, 2
        // Predicated region
        $region37: #{tpu_custom_call.1} parent=35 // pred_check
          %p206 = pneg %p68
        $region38: #{tpu_custom_call.1} parent=35 // pred_check_branch
          %208 = sbr.rel (%p206) target = $region40
        $region39: #{tpu_custom_call.1} parent=35 // pred_region
          %s209 = sand.u32 %s53, 1
          %s210 = scalar_lea.sflag [#allocation4], %s209
          %s211 = sand.u32 %s53, 1
          %s212 = smul.addr %s211, 8
          %s213 = scalar_lea.vmem [#allocation5], %s212
          %215 = dma.done %s210, 128
        $region40: #{tpu_custom_call.1} parent=35 // pred_fallthru
          _
      $region36: #{tpu_custom_call.1} parent=5 // pred_fallthru
        _
    $region6: #{tpu_custom_call.1} parent=1 // loop_footer
      %s17 = sadd.s32 1, %s13
    $region7: #{tpu_custom_call.1} parent=1 // loop_footer_branch
      %12 = sbr.rel target = $region3
    $region8: #{tpu_custom_call.1} parent=1 // loop_exit
      _
    %216 = vsyncpa [#allocation3], 1
    %s217 = scalar_lea.sflag [#allocation3], 1
    %218 = vsyncpa %s217, 1
    %219 = vsyncpa [#allocation4], 1
    %s220 = scalar_lea.sflag [#allocation4], 1
    %221 = vsyncpa %s220, 1

</llo_original>
